<compile_context>
chip_gen: v7x
topology: tpu7x:2x2x1
jax: 0.10.0
libtpu: 0.0.40
codegen_flags: <defaults>
</compile_context>

<pallas_src>
import functools

import jax
import jax.numpy as jnp
from jax import lax
from jax.experimental import pallas as pl
from jax.experimental.pallas import tpu as pltpu

F_IN = 5          # input features
H = 23            # hidden units
PW = F_IN + 3     # packed params: [ w1 (5 cols) | b1 | w2 | b2 (row 0) ]


def bpnet_kernel(x_ref, p_ref, o_ref, *, compute_dtype, chunk):
    # x_ref: [F_IN, TB]  (batch on lanes)
    # p_ref: [H, PW]     packed weights (resident in VMEM)
    # o_ref: [1, TB]     lane-dense output
    p = p_ref[...]
    w1 = p[:, 0:F_IN].astype(compute_dtype)               # [H, F_IN]
    b1 = p[:, F_IN:F_IN + 1].astype(compute_dtype)        # [H, 1]
    w2 = p[:, F_IN + 1:F_IN + 2].astype(compute_dtype)    # [H, 1]
    b2 = p[0:1, F_IN + 2:F_IN + 3]                        # [1, 1]  (kept f32)

    n_chunks = x_ref.shape[1] // chunk

    def body(c, carry):
        off = c * chunk
        if not isinstance(off, int):
            off = pl.multiple_of(off, chunk)
        xc = x_ref[:, pl.ds(off, chunk)].astype(compute_dtype)   # [F_IN, chunk]

        # Layer 1 on the VPU: K=5 broadcast multiply-adds (no MXU fill/drain).
        h = w1[:, 0:1] * xc[0:1, :]                               # [H, chunk]
        for k in range(1, F_IN):
            h = h + w1[:, k:k + 1] * xc[k:k + 1, :]
        h = jnp.maximum(h + b1, 0)                                # bias + ReLU

        # Layer 2: elementwise scale (compute dtype) + f32 sublane reduce (XLU).
        y = jnp.sum((h * w2).astype(jnp.float32), axis=0, keepdims=True) + b2
        o_ref[:, pl.ds(off, chunk)] = y.astype(o_ref.dtype)       # lane-dense store
        return carry

    # Keeps live ranges per 512-lane strip bounded (h never round-trips VMEM).
    lax.fori_loop(0, n_chunks, body, 0, unroll=True)


def _round_up(v, m):
    return ((v + m - 1) // m) * m


def bpnet_forward_fm(x_fm, params, *, tile_b=8192, compute_dtype=jnp.float32):
    """Fast path. x_fm: [F_IN, B] feature-major (produce this layout upstream).

    Returns [B, 1] float32.
    """
    assert x_fm.shape[0] == F_IN
    B = x_fm.shape[1]

    tile = max(128, _round_up(int(tile_b), 128))   # lane tiles must be 128-multiples
    b128 = _round_up(B, 128)
    tb = min(tile, b128)
    # Keep >= 2 grid steps so a v7x megacore can shard the batch axis
    # (costs at most one extra ~0.35us step elsewhere).
    if b128 // tb < 2 and b128 >= 256:
        tb = max(128, (b128 // 2) // 128 * 128)
    bp = _round_up(B, tb)                          # grid covers bp exactly

    if bp == B:
        xin = x_fm                                 # no extra host pass
    else:
        xin = jnp.zeros((F_IN, bp), x_fm.dtype).at[:, :B].set(x_fm)

    chunk = 512
    while tb % chunk:
        chunk //= 2

    cost = pl.CostEstimate(
        flops=(2 * F_IN * H + 2 * H + 2 * H) * B,  # layer 1 + bias/ReLU + layer 2
        transcendentals=0,
        bytes_accessed=F_IN * B * x_fm.dtype.itemsize + B * 4 + H * PW * 4,
    )

    kernel = functools.partial(bpnet_kernel, compute_dtype=compute_dtype, chunk=chunk)

    out = pl.pallas_call(
        kernel,
        out_shape=jax.ShapeDtypeStruct((1, bp), jnp.float32),
        grid=(bp // tb,),
        in_specs=[
            pl.BlockSpec((F_IN, tb), lambda i: (0, i)),   # pipelined input tile
            pl.BlockSpec((H, PW), lambda i: (0, 0)),      # packed params, resident
        ],
        out_specs=pl.BlockSpec((1, tb), lambda i: (0, i)),  # lane-dense output
        compiler_params=pltpu.CompilerParams(
            dimension_semantics=("parallel",),            # megacore sharding (v7x)
        ),
        cost_estimate=cost,
    )(xin, params)

    return out[:, :B].reshape(B, 1)                       # [1,B] -> [B,1] is free


def bpnet_forward(x, params, *, tile_b=8192, compute_dtype=jnp.float32):
    """PyTorch-layout convenience path: x [B, F_IN] -> [B, 1].

    NOTE: the x.T below is an extra XLA pass over x; prefer producing x
    feature-major upstream and calling bpnet_forward_fm directly.
    """
    assert x.shape[1] == F_IN
    return bpnet_forward_fm(x.T, params, tile_b=tile_b, compute_dtype=compute_dtype)


def init_params(key):
    """PyTorch nn.Linear default init: U(-1/sqrt(fan_in), 1/sqrt(fan_in))."""
    k1, k2, k3, k4 = jax.random.split(key, 4)
    bound1 = 1.0 / jnp.sqrt(float(F_IN))
    bound2 = 1.0 / jnp.sqrt(float(H))
    w1 = jax.random.uniform(k1, (H, F_IN), jnp.float32, -bound1, bound1)  # fc1.weight
    b1 = jax.random.uniform(k2, (H,), jnp.float32, -bound1, bound1)       # fc1.bias
    w2 = jax.random.uniform(k3, (H,), jnp.float32, -bound2, bound2)       # fc2.weight^T
    b2 = jax.random.uniform(k4, (), jnp.float32, -bound2, bound2)         # fc2.bias
    return w1, b1, w2, b2


def pack_params(w1, b1, w2, b2):
    """Pack all params into one resident [H, PW] operand (one pipeline, not four)."""
    p = jnp.zeros((H, PW), jnp.float32)
    p = p.at[:, :F_IN].set(w1)
    p = p.at[:, F_IN].set(b1)
    p = p.at[:, F_IN + 1].set(w2)
    p = p.at[0, F_IN + 2].set(b2)
    return p


if __name__ == "__main__":
    key = jax.random.PRNGKey(0)
    kx, kx2, kp = jax.random.split(key, 3)

    w1, b1, w2, b2 = init_params(kp)
    params = pack_params(w1, b1, w2, b2)

    def torch_ref(x_bm):
        # relu(x @ W1^T + b1) @ W2^T + b2  (PyTorch forward semantics)
        return jnp.maximum(x_bm @ w1.T + b1, 0.0) @ w2[:, None] + b2

    # --- Fast path: producer ships x feature-major [F_IN, B] (no host transpose).
    B = 1024
    x_fm = jax.random.normal(kx, (F_IN, B), jnp.float32)
    out = jax.block_until_ready(bpnet_forward_fm(x_fm, params))
    ref = torch_ref(x_fm.T)
    assert out.shape == (B, 1)
    assert jnp.allclose(out, ref, atol=1e-5, rtol=1e-5)

    # --- PyTorch-layout convenience path + ragged batch (exercises tail padding).
    B2 = 300
    x_bm = jax.random.normal(kx2, (B2, F_IN), jnp.float32)
    out2 = jax.block_until_ready(bpnet_forward(x_bm, params, tile_b=128))
    assert out2.shape == (B2, 1)
    assert jnp.allclose(out2, torch_ref(x_bm), atol=1e-5, rtol=1e-5)

    # --- bf16 VPU path for v6e/v7x (packed bf16 VALU ~2x; input DMA halves).
    kind = jax.devices()[0].device_kind.lower()
    if any(t in kind for t in ("v6", "v7", "7x")):
        out_bf16 = jax.block_until_ready(
            bpnet_forward_fm(x_fm.astype(jnp.bfloat16), params,
                             compute_dtype=jnp.bfloat16))
        assert jnp.allclose(out_bf16, ref, atol=3e-2, rtol=3e-2)

    print("KERNEL_OK")
</pallas_src>

<mosaic_0001>
module attributes {stable_mosaic.version = 11 : i64} {
  func.func @bpnet_kernel(%arg0: i32, %arg1: memref<5x512xf32, #tpu.memory_space<vmem>>, %arg2: memref<23x8xf32, #tpu.memory_space<vmem>>, %arg3: memref<1x512xf32, #tpu.memory_space<vmem>>) attributes {dimension_semantics = [#tpu.dimension_semantics<parallel>], iteration_bounds = array<i64: 2>, scalar_prefetch = 0 : i64, scratch_operands = 0 : i64, tpu.core_type = #tpu.core_type<tc>, window_params = [{transform_indices = @transform_0, window_bounds = array<i64: 5, 512>}, {pipeline_mode = #tpu.pipeline_mode<synchronous>, transform_indices = @transform_1, window_bounds = array<i64: 23, 8>}, {transform_indices = @transform_2, window_bounds = array<i64: 1, 512>}]} {
    %c0 = arith.constant 0 : index
    %c0_0 = arith.constant 0 : index
    %0 = vector.load %arg2[%c0, %c0_0] : memref<23x8xf32, #tpu.memory_space<vmem>>, vector<23x8xf32>
    %1 = vector.extract_strided_slice %0 {offsets = [0, 0], sizes = [23, 5], strides = [1, 1]} : vector<23x8xf32> to vector<23x5xf32>
    %2 = vector.extract_strided_slice %0 {offsets = [0, 5], sizes = [23, 1], strides = [1, 1]} : vector<23x8xf32> to vector<23x1xf32>
    %3 = vector.extract_strided_slice %0 {offsets = [0, 6], sizes = [23, 1], strides = [1, 1]} : vector<23x8xf32> to vector<23x1xf32>
    %4 = vector.extract_strided_slice %0 {offsets = [0, 7], sizes = [1, 1], strides = [1, 1]} : vector<23x8xf32> to vector<1x1xf32>
    %c0_i32 = arith.constant 0 : i32
    %c512_i32 = arith.constant 512 : i32
    %5 = arith.muli %c0_i32, %c512_i32 : i32
    %6 = tpu.assume_multiple %5, 512 : i32
    %c0_1 = arith.constant 0 : index
    %7 = arith.index_cast %6 : i32 to index
    %8 = vector.load %arg1[%c0_1, %7] : memref<5x512xf32, #tpu.memory_space<vmem>>, vector<5x512xf32>
    %9 = vector.extract_strided_slice %1 {offsets = [0, 0], sizes = [23, 1], strides = [1, 1]} : vector<23x5xf32> to vector<23x1xf32>
    %10 = vector.extract_strided_slice %8 {offsets = [0, 0], sizes = [1, 512], strides = [1, 1]} : vector<5x512xf32> to vector<1x512xf32>
    %11 = vector.broadcast %9 : vector<23x1xf32> to vector<23x512xf32>
    %12 = vector.broadcast %10 : vector<1x512xf32> to vector<23x512xf32>
    %13 = arith.mulf %11, %12 : vector<23x512xf32>
    %14 = vector.extract_strided_slice %1 {offsets = [0, 1], sizes = [23, 1], strides = [1, 1]} : vector<23x5xf32> to vector<23x1xf32>
    %15 = vector.extract_strided_slice %8 {offsets = [1, 0], sizes = [1, 512], strides = [1, 1]} : vector<5x512xf32> to vector<1x512xf32>
    %16 = vector.broadcast %14 : vector<23x1xf32> to vector<23x512xf32>
    %17 = vector.broadcast %15 : vector<1x512xf32> to vector<23x512xf32>
    %18 = arith.mulf %16, %17 : vector<23x512xf32>
    %19 = arith.addf %13, %18 : vector<23x512xf32>
    %20 = vector.extract_strided_slice %1 {offsets = [0, 2], sizes = [23, 1], strides = [1, 1]} : vector<23x5xf32> to vector<23x1xf32>
    %21 = vector.extract_strided_slice %8 {offsets = [2, 0], sizes = [1, 512], strides = [1, 1]} : vector<5x512xf32> to vector<1x512xf32>
    %22 = vector.broadcast %20 : vector<23x1xf32> to vector<23x512xf32>
    %23 = vector.broadcast %21 : vector<1x512xf32> to vector<23x512xf32>
    %24 = arith.mulf %22, %23 : vector<23x512xf32>
    %25 = arith.addf %19, %24 : vector<23x512xf32>
    %26 = vector.extract_strided_slice %1 {offsets = [0, 3], sizes = [23, 1], strides = [1, 1]} : vector<23x5xf32> to vector<23x1xf32>
    %27 = vector.extract_strided_slice %8 {offsets = [3, 0], sizes = [1, 512], strides = [1, 1]} : vector<5x512xf32> to vector<1x512xf32>
    %28 = vector.broadcast %26 : vector<23x1xf32> to vector<23x512xf32>
    %29 = vector.broadcast %27 : vector<1x512xf32> to vector<23x512xf32>
    %30 = arith.mulf %28, %29 : vector<23x512xf32>
    %31 = arith.addf %25, %30 : vector<23x512xf32>
    %32 = vector.extract_strided_slice %1 {offsets = [0, 4], sizes = [23, 1], strides = [1, 1]} : vector<23x5xf32> to vector<23x1xf32>
    %33 = vector.extract_strided_slice %8 {offsets = [4, 0], sizes = [1, 512], strides = [1, 1]} : vector<5x512xf32> to vector<1x512xf32>
    %34 = vector.broadcast %32 : vector<23x1xf32> to vector<23x512xf32>
    %35 = vector.broadcast %33 : vector<1x512xf32> to vector<23x512xf32>
    %36 = arith.mulf %34, %35 : vector<23x512xf32>
    %37 = arith.addf %31, %36 : vector<23x512xf32>
    %38 = vector.broadcast %2 : vector<23x1xf32> to vector<23x512xf32>
    %39 = arith.addf %37, %38 : vector<23x512xf32>
    %cst = arith.constant 0.000000e+00 : f32
    %40 = vector.broadcast %cst : f32 to vector<23x512xf32>
    %41 = arith.maximumf %39, %40 : vector<23x512xf32>
    %42 = vector.broadcast %3 : vector<23x1xf32> to vector<23x512xf32>
    %43 = arith.mulf %41, %42 : vector<23x512xf32>
    %cst_2 = arith.constant dense<0.000000e+00> : vector<512xf32>
    %44 = vector.multi_reduction <add>, %43, %cst_2 [0] : vector<23x512xf32> to vector<512xf32>
    %45 = vector.shape_cast %44 : vector<512xf32> to vector<1x512xf32>
    %46 = vector.broadcast %4 : vector<1x1xf32> to vector<1x512xf32>
    %47 = arith.addf %45, %46 : vector<1x512xf32>
    %c0_3 = arith.constant 0 : index
    %48 = arith.index_cast %6 : i32 to index
    %49 = vector.load %arg3[%c0_3, %48] : memref<1x512xf32, #tpu.memory_space<vmem>>, vector<1x512xf32>
    tpu.vector_store %arg3[%c0_3, %48], %47 {strides = array<i32>} : memref<1x512xf32, #tpu.memory_space<vmem>>, vector<1x512xf32>,
    %c1_i32 = arith.constant 1 : i32
    return
  }
  func.func @transform_0(%arg0: i32) -> (i32, i32) {
    %c0_i32 = arith.constant 0 : i32
    %c0_i32_0 = arith.constant 0 : i32
    return %c0_i32, %arg0 : i32, i32
  }
  func.func @transform_1(%arg0: i32) -> (i32, i32) {
    %c0_i32 = arith.constant 0 : i32
    %c0_i32_0 = arith.constant 0 : i32
    %c0_i32_1 = arith.constant 0 : i32
    return %c0_i32, %c0_i32_0 : i32, i32
  }
  func.func @transform_2(%arg0: i32) -> (i32, i32) {
    %c0_i32 = arith.constant 0 : i32
    %c0_i32_0 = arith.constant 0 : i32
    return %c0_i32, %arg0 : i32, i32
  }
}

</mosaic_0001>

<llo_original>
// kernel: tpu_custom_call.1
$region0: #{tpu_custom_call.1}
  #allocation0 [shape = 'u32[]', space=smem, size = 0x4, offset = 0x4, fixed_abs, tag = 'smem constant byte address 0x4 - core index']
  #allocation1 [shape = 'u32[144,128]{1,0:T(1,128)}', space=vmem, size = 0x12000, scoped, tag = 'internal scratch']
  %s0 = inlined_call_operand.hbm [shape: f32[5,1024], index: 0, kind: input, shape index: {}]
  %s1 = inlined_call_operand.vmem [shape: f32[23,8], index: 1, kind: input, shape index: {}]
  %s2 = inlined_call_operand.hbm [shape: f32[1,1024], index: 2, kind: output, shape index: {}]
  %s3 = sld [smem:[#allocation0]]
  $region45: #{tpu_custom_call.1} parent=0
    _
  %s5 = ssub.s32 1, %s3
  %s6 = scalar_select 0, %s5, %s3
  $region1: #{tpu_custom_call.1} parent=0
    #allocation2 [shape = 'u8[32768]{0}', space=vmem, size = 0x8000, scoped, tag = 'input window, operand 0']
    #allocation3 [shape = 's32[2]{0}', space=sflag, size = 0x8, scoped, tag = 'scoped memory for tpu_custom_call.1']
    #allocation4 [shape = 's32[2]{0}', space=sflag, size = 0x8, scoped, tag = 'scoped memory for tpu_custom_call.1']
    #allocation5 [shape = 'u8[4096]{0}', space=vmem, size = 0x1000, scoped, tag = 'output window, operand 0']
    %7 = vsyncpa [#allocation3], 0
    %s8 = scalar_lea.sflag [#allocation3], 1
    %9 = vsyncpa %s8, 0
    %10 = vsyncpa [#allocation4], 0
    %s11 = scalar_lea.sflag [#allocation4], 1
    %12 = vsyncpa %s11, 0
    loop: start=0, step=1, limit=4
    $region2: #{tpu_custom_call.1} parent=1 // loop_pre_header
      _
    $region3: #{tpu_custom_call.1} parent=1 // loop_header
      %s14 = sphi 0, %s18
      %p15 = scmp.ge.s32.totalorder %s14, 4
      %s24 = sphi 0, %s26
      %s27 = sphi 0, %s24
      %s28 = sphi 0, %s27
      %s44 = sphi 0, %s28
      %s48 = sphi 0, %s48
      %s50 = sphi 0, %s48
      %s51 = sphi 0, %s50
      %s65 = sphi 0, %s51
      %s71 = sphi 0, %s73
      %s74 = sphi 0, %s71
      %s75 = sphi 0, %s74
      %s91 = sphi 0, %s75
    $region4: #{tpu_custom_call.1} parent=1 // loop_header_branch
      %17 = sbr.rel (%p15) target = $region8
    $region5: #{tpu_custom_call.1} parent=1 // loop_body
      %s19 = ssub.s32 %s14, 1
      %s20 = ssub.s32 %s14, 2
      %s21 = sadd.s32 %s14, 1
      %s22 = ssub.s32 %s14, %s21
      %p23 = scmp.eq.s32.totalorder %s22, 0
      %s25 = sadd.s32 %s24, 1
      %s26 = scalar_select %p23, %s24, %s25
      %p29 = pneg %p23
      %p30 = scmp.eq.s32.totalorder %s14, 1
      %p31 = por %p29, %p30
      %p32 = scmp.ne.s32.totalorder %s24, %s27
      %p33 = scmp.eq.s32.totalorder %s14, 0
      %p34 = por %p32, %p33
      %p35 = scmp.ne.s32.totalorder %s24, %s27
      %p36 = scmp.eq.s32.totalorder %s19, 1
      %p37 = por %p35, %p36
      %p38 = scmp.ne.s32.totalorder %s27, %s28
      %p39 = scmp.eq.s32.totalorder %s19, 0
      %p40 = por %p38, %p39
      %p41 = scmp.ne.s32.totalorder %s27, %s28
      %p42 = scmp.eq.s32.totalorder %s20, 1
      %p43 = por %p41, %p42
      %p45 = scmp.ne.s32.totalorder %s28, %s44
      %p46 = scmp.eq.s32.totalorder %s20, 0
      %p47 = por %p45, %p46
      %s49 = sadd.s32 %s48, 1
      %p52 = scmp.eq.s32.totalorder %s14, 1
      %p53 = scmp.ne.s32.totalorder %s48, %s50
      %p54 = scmp.eq.s32.totalorder %s14, 0
      %p55 = por %p53, %p54
      %p56 = scmp.ne.s32.totalorder %s48, %s50
      %p57 = scmp.eq.s32.totalorder %s19, 1
      %p58 = por %p56, %p57
      %p59 = scmp.ne.s32.totalorder %s50, %s51
      %p60 = scmp.eq.s32.totalorder %s19, 0
      %p61 = por %p59, %p60
      %p62 = scmp.ne.s32.totalorder %s50, %s51
      %p63 = scmp.eq.s32.totalorder %s20, 1
      %p64 = por %p62, %p63
      %p66 = scmp.ne.s32.totalorder %s51, %s65
      %p67 = scmp.eq.s32.totalorder %s20, 0
      %p68 = por %p66, %p67
      %s69 = ssub.s32 %s14, %s21
      %p70 = scmp.eq.s32.totalorder %s69, 0
      %s72 = sadd.s32 %s71, 1
      %s73 = scalar_select %p70, %s71, %s72
      %p76 = pneg %p70
      %p77 = scmp.eq.s32.totalorder %s14, 1
      %p78 = por %p76, %p77
      %p79 = scmp.ne.s32.totalorder %s71, %s74
      %p80 = scmp.eq.s32.totalorder %s14, 0
      %p81 = por %p79, %p80
      %p82 = scmp.ne.s32.totalorder %s71, %s74
      %p83 = scmp.eq.s32.totalorder %s19, 1
      %p84 = por %p82, %p83
      %p85 = scmp.ne.s32.totalorder %s74, %s75
      %p86 = scmp.eq.s32.totalorder %s19, 0
      %p87 = por %p85, %p86
      %p88 = scmp.ne.s32.totalorder %s74, %s75
      %p89 = scmp.eq.s32.totalorder %s20, 1
      %p90 = por %p88, %p89
      %p92 = scmp.ne.s32.totalorder %s75, %s91
      %p93 = scmp.eq.s32.totalorder %s20, 0
      %p94 = por %p92, %p93
      %p95 = scmp.le.s32.totalorder 1, %s14
      %p96 = scmp.lt.s32.totalorder %s14, 3
      %p97 = pnand %p95, %p96
      %p98 = pneg %p97
      // Predicated region
      $region9: #{tpu_custom_call.1} parent=5 // pred_check
        _
      $region10: #{tpu_custom_call.1} parent=5 // pred_check_branch
        %100 = sbr.rel (%p97) target = $region12
      $region11: #{tpu_custom_call.1} parent=5 // pred_region
        %s101 = ssub.s32 %s14, 1
        // Predicated region
        $region13: #{tpu_custom_call.1} parent=11 // pred_check
          %p102 = pneg %p61
        $region14: #{tpu_custom_call.1} parent=11 // pred_check_branch
          %104 = sbr.rel (%p102) target = $region16
        $region15: #{tpu_custom_call.1} parent=11 // pred_region
          _
        $region16: #{tpu_custom_call.1} parent=11 // pred_fallthru
          _
      $region12: #{tpu_custom_call.1} parent=5 // pred_fallthru
        _
      %p105 = scmp.lt.s32.totalorder %s14, 2
      // Predicated region
      $region17: #{tpu_custom_call.1} parent=5 // pred_check
        %p106 = pneg %p105
      $region18: #{tpu_custom_call.1} parent=5 // pred_check_branch
        %108 = sbr.rel (%p106) target = $region20
      $region19: #{tpu_custom_call.1} parent=5 // pred_region
        // Predicated region
        $region21: #{tpu_custom_call.1} parent=19 // pred_check
          %p109 = pneg %p34
        $region22: #{tpu_custom_call.1} parent=19 // pred_check_branch
          %111 = sbr.rel (%p109) target = $region24
        $region23: #{tpu_custom_call.1} parent=19 // pred_region
          %s112 = sand.u32 %s24, 1
          %s113 = scalar_lea.sflag [#allocation3], %s112
          %s114 = sand.u32 %s24, 1
          %s115 = smul.addr %s114, 32
          %s116 = scalar_lea.vmem [#allocation2], %s115
          %s117 = smul.u32 4, %s14
          %s119 = ssub.s32 512, 512
          %120 = vsyncadd %s113, %s119
          %s121 = smul.addr %s117, 128
          %s122 = scalar_lea.hbm %s0, %s121
          %s124 = sshll.u32 %s116, 4
          %s125 = int_to_ptr.vmem [resolvable:$true] %s124
          %127 = dma.hbm_to_vmem [thread:$0]  %s122, 512, %s125, %s113
        $region24: #{tpu_custom_call.1} parent=19 // pred_fallthru
          _
      $region20: #{tpu_custom_call.1} parent=5 // pred_fallthru
        _
      %p128 = scmp.le.s32.totalorder 1, %s14
      %p129 = scmp.lt.s32.totalorder %s14, 3
      %p130 = pnand %p128, %p129
      %p131 = pneg %p130
      // Predicated region
      $region25: #{tpu_custom_call.1} parent=5 // pred_check
        _
      $region26: #{tpu_custom_call.1} parent=5 // pred_check_branch
        %133 = sbr.rel (%p130) target = $region28
      $region27: #{tpu_custom_call.1} parent=5 // pred_region
        %s134 = ssub.s32 %s14, 1
        %s135 = sand.u32 %s27, 1
        %s136 = scalar_lea.sflag [#allocation3], %s135
        %s137 = sand.u32 %s27, 1
        %s138 = smul.addr %s137, 32
        %s139 = scalar_lea.vmem [#allocation2], %s138
        // Predicated region
        $region29: #{tpu_custom_call.1} parent=27 // pred_check
          %p140 = pneg %p40
        $region30: #{tpu_custom_call.1} parent=27 // pred_check_branch
          %142 = sbr.rel (%p140) target = $region32
        $region31: #{tpu_custom_call.1} parent=27 // pred_region
          %143 = dma.done %s136, 512
        $region32: #{tpu_custom_call.1} parent=27 // pred_fallthru
          _
        %s144 = sand.u32 %s27, 1
        %s145 = scalar_lea.sflag [#allocation3], %s144
        %s146 = sand.u32 %s27, 1
        %s147 = smul.addr %s146, 32
        %s148 = scalar_lea.vmem [#allocation2], %s147
        %p149 = pneg %p40
        %p150 = pneg %p37
        %p151 = pneg %p61
        %p152 = pneg %p58
        %p153 = pneg %p87
        %p154 = pneg %p84
        %s155 = sand.u32 %s74, 1
        %s156 = scalar_lea.sflag [#allocation4], %s155
        %s157 = sand.u32 %s74, 1
        %s158 = smul.addr %s157, 4
        %s159 = scalar_lea.vmem [#allocation5], %s158
        %s160 = smul.u32 4, %s19
        %s161 = smul.u32 4, %s19
        %v162 = vld [vmem:[%s1] sm:$0xff]
        %v163 = vld [vmem:[%s1 + $0x8] sm:$0xff]
        %v164 = vld [vmem:[%s1 + $0x10] sm:$0x7f]
        %v165 = vld [vmem:[%s139] sm:$0x1f]
        %v166 = vld [vmem:[%s139 + $0x8] sm:$0x1f]
        %v167 = vld [vmem:[%s139 + $0x10] sm:$0x1f]
        %v168 = vld [vmem:[%s139 + $0x18] sm:$0x1f]
        %170 = vset.pattern.permute.xlu0 0
        %171 = vperm.xlu0 %170, %v162
        %v172 = vpop.permute.xlu0 %171
        %175 = vset.pattern.permute.xlu0 0
        %176 = vperm.xlu0 %175, %v163
        %v177 = vpop.permute.xlu0 %176
        %180 = vset.pattern.permute.xlu0 0
        %181 = vperm.xlu0 %180, %v164
        %v182 = vpop.permute.xlu0 %181
        %v184 = vlaneseq
        %v185 = vshrl.u32 %v184, 7
        %v186 = vsub.s32 0, %v185
        %v187 = vrot.slane %v165, %v186
        %v188 = vlaneseq
        %v189 = vshrl.u32 %v188, 7
        %v190 = vsub.s32 0, %v189
        %v191 = vrot.slane %v166, %v190
        %v192 = vlaneseq
        %v193 = vshrl.u32 %v192, 7
        %v194 = vsub.s32 0, %v193
        %v195 = vrot.slane %v167, %v194
        %v196 = vlaneseq
        %v197 = vshrl.u32 %v196, 7
        %v198 = vsub.s32 0, %v197
        %v199 = vrot.slane %v168, %v198
        %v200 = vmul.f32 %v172, %v187
        %v201 = vmul.f32 %v172, %v191
        %v202 = vmul.f32 %v172, %v195
        %v203 = vmul.f32 %v172, %v199
        %v204 = vmul.f32 %v177, %v187
        %v205 = vmul.f32 %v177, %v191
        %v206 = vmul.f32 %v177, %v195
        %v207 = vmul.f32 %v177, %v199
        %v208 = vmul.f32 %v182, %v187
        %v209 = vmul.f32 %v182, %v191
        %v210 = vmul.f32 %v182, %v195
        %v211 = vmul.f32 %v182, %v199
        %212 = vset.pattern.permute.xlu0 1
        %213 = vperm.xlu0 %212, %v162
        %v214 = vpop.permute.xlu0 %213
        %216 = vset.pattern.permute.xlu0 1
        %217 = vperm.xlu0 %216, %v163
        %v218 = vpop.permute.xlu0 %217
        %220 = vset.pattern.permute.xlu0 1
        %221 = vperm.xlu0 %220, %v164
        %v222 = vpop.permute.xlu0 %221
        %v224 = vlaneseq
        %v225 = vshrl.u32 %v224, 7
        %v226 = vsub.s32 1, %v225
        %v227 = vrot.slane %v165, %v226
        %v228 = vlaneseq
        %v229 = vshrl.u32 %v228, 7
        %v230 = vsub.s32 1, %v229
        %v231 = vrot.slane %v166, %v230
        %v232 = vlaneseq
        %v233 = vshrl.u32 %v232, 7
        %v234 = vsub.s32 1, %v233
        %v235 = vrot.slane %v167, %v234
        %v236 = vlaneseq
        %v237 = vshrl.u32 %v236, 7
        %v238 = vsub.s32 1, %v237
        %v239 = vrot.slane %v168, %v238
        %v240 = vmul.f32 %v214, %v227
        %v241 = vmul.f32 %v214, %v231
        %v242 = vmul.f32 %v214, %v235
        %v243 = vmul.f32 %v214, %v239
        %v244 = vmul.f32 %v218, %v227
        %v245 = vmul.f32 %v218, %v231
        %v246 = vmul.f32 %v218, %v235
        %v247 = vmul.f32 %v218, %v239
        %v248 = vmul.f32 %v222, %v227
        %v249 = vmul.f32 %v222, %v231
        %v250 = vmul.f32 %v222, %v235
        %v251 = vmul.f32 %v222, %v239
        %v252 = vadd.f32 %v200, %v240
        %v253 = vadd.f32 %v201, %v241
        %v254 = vadd.f32 %v202, %v242
        %v255 = vadd.f32 %v203, %v243
        %v256 = vadd.f32 %v204, %v244
        %v257 = vadd.f32 %v205, %v245
        %v258 = vadd.f32 %v206, %v246
        %v259 = vadd.f32 %v207, %v247
        %v260 = vadd.f32 %v208, %v248
        %v261 = vadd.f32 %v209, %v249
        %v262 = vadd.f32 %v210, %v250
        %v263 = vadd.f32 %v211, %v251
        %264 = vset.pattern.permute.xlu0 2
        %265 = vperm.xlu0 %264, %v162
        %v266 = vpop.permute.xlu0 %265
        %268 = vset.pattern.permute.xlu0 2
        %269 = vperm.xlu0 %268, %v163
        %v270 = vpop.permute.xlu0 %269
        %272 = vset.pattern.permute.xlu0 2
        %273 = vperm.xlu0 %272, %v164
        %v274 = vpop.permute.xlu0 %273
        %v276 = vlaneseq
        %v277 = vshrl.u32 %v276, 7
        %v278 = vsub.s32 2, %v277
        %v279 = vrot.slane %v165, %v278
        %v280 = vlaneseq
        %v281 = vshrl.u32 %v280, 7
        %v282 = vsub.s32 2, %v281
        %v283 = vrot.slane %v166, %v282
        %v284 = vlaneseq
        %v285 = vshrl.u32 %v284, 7
        %v286 = vsub.s32 2, %v285
        %v287 = vrot.slane %v167, %v286
        %v288 = vlaneseq
        %v289 = vshrl.u32 %v288, 7
        %v290 = vsub.s32 2, %v289
        %v291 = vrot.slane %v168, %v290
        %v292 = vmul.f32 %v266, %v279
        %v293 = vmul.f32 %v266, %v283
        %v294 = vmul.f32 %v266, %v287
        %v295 = vmul.f32 %v266, %v291
        %v296 = vmul.f32 %v270, %v279
        %v297 = vmul.f32 %v270, %v283
        %v298 = vmul.f32 %v270, %v287
        %v299 = vmul.f32 %v270, %v291
        %v300 = vmul.f32 %v274, %v279
        %v301 = vmul.f32 %v274, %v283
        %v302 = vmul.f32 %v274, %v287
        %v303 = vmul.f32 %v274, %v291
        %v304 = vadd.f32 %v252, %v292
        %v305 = vadd.f32 %v253, %v293
        %v306 = vadd.f32 %v254, %v294
        %v307 = vadd.f32 %v255, %v295
        %v308 = vadd.f32 %v256, %v296
        %v309 = vadd.f32 %v257, %v297
        %v310 = vadd.f32 %v258, %v298
        %v311 = vadd.f32 %v259, %v299
        %v312 = vadd.f32 %v260, %v300
        %v313 = vadd.f32 %v261, %v301
        %v314 = vadd.f32 %v262, %v302
        %v315 = vadd.f32 %v263, %v303
        %316 = vset.pattern.permute.xlu0 3
        %317 = vperm.xlu0 %316, %v162
        %v318 = vpop.permute.xlu0 %317
        %320 = vset.pattern.permute.xlu0 3
        %321 = vperm.xlu0 %320, %v163
        %v322 = vpop.permute.xlu0 %321
        %324 = vset.pattern.permute.xlu0 3
        %325 = vperm.xlu0 %324, %v164
        %v326 = vpop.permute.xlu0 %325
        %v328 = vlaneseq
        %v329 = vshrl.u32 %v328, 7
        %v330 = vsub.s32 3, %v329
        %v331 = vrot.slane %v165, %v330
        %v332 = vlaneseq
        %v333 = vshrl.u32 %v332, 7
        %v334 = vsub.s32 3, %v333
        %v335 = vrot.slane %v166, %v334
        %v336 = vlaneseq
        %v337 = vshrl.u32 %v336, 7
        %v338 = vsub.s32 3, %v337
        %v339 = vrot.slane %v167, %v338
        %v340 = vlaneseq
        %v341 = vshrl.u32 %v340, 7
        %v342 = vsub.s32 3, %v341
        %v343 = vrot.slane %v168, %v342
        %v344 = vmul.f32 %v318, %v331
        %v345 = vmul.f32 %v318, %v335
        %v346 = vmul.f32 %v318, %v339
        %v347 = vmul.f32 %v318, %v343
        %v348 = vmul.f32 %v322, %v331
        %v349 = vmul.f32 %v322, %v335
        %v350 = vmul.f32 %v322, %v339
        %v351 = vmul.f32 %v322, %v343
        %v352 = vmul.f32 %v326, %v331
        %v353 = vmul.f32 %v326, %v335
        %v354 = vmul.f32 %v326, %v339
        %v355 = vmul.f32 %v326, %v343
        %v356 = vadd.f32 %v304, %v344
        %v357 = vadd.f32 %v305, %v345
        %v358 = vadd.f32 %v306, %v346
        %v359 = vadd.f32 %v307, %v347
        %v360 = vadd.f32 %v308, %v348
        %v361 = vadd.f32 %v309, %v349
        %v362 = vadd.f32 %v310, %v350
        %v363 = vadd.f32 %v311, %v351
        %v364 = vadd.f32 %v312, %v352
        %v365 = vadd.f32 %v313, %v353
        %v366 = vadd.f32 %v314, %v354
        %v367 = vadd.f32 %v315, %v355
        %368 = vset.pattern.permute.xlu0 4
        %369 = vperm.xlu0 %368, %v162
        %v370 = vpop.permute.xlu0 %369
        %372 = vset.pattern.permute.xlu0 4
        %373 = vperm.xlu0 %372, %v163
        %v374 = vpop.permute.xlu0 %373
        %376 = vset.pattern.permute.xlu0 4
        %377 = vperm.xlu0 %376, %v164
        %v378 = vpop.permute.xlu0 %377
        %v380 = vlaneseq
        %v381 = vshrl.u32 %v380, 7
        %v382 = vsub.s32 4, %v381
        %v383 = vrot.slane %v165, %v382
        %v384 = vlaneseq
        %v385 = vshrl.u32 %v384, 7
        %v386 = vsub.s32 4, %v385
        %v387 = vrot.slane %v166, %v386
        %v388 = vlaneseq
        %v389 = vshrl.u32 %v388, 7
        %v390 = vsub.s32 4, %v389
        %v391 = vrot.slane %v167, %v390
        %v392 = vlaneseq
        %v393 = vshrl.u32 %v392, 7
        %v394 = vsub.s32 4, %v393
        %v395 = vrot.slane %v168, %v394
        %v396 = vmul.f32 %v370, %v383
        %v397 = vmul.f32 %v370, %v387
        %v398 = vmul.f32 %v370, %v391
        %v399 = vmul.f32 %v370, %v395
        %v400 = vmul.f32 %v374, %v383
        %v401 = vmul.f32 %v374, %v387
        %v402 = vmul.f32 %v374, %v391
        %v403 = vmul.f32 %v374, %v395
        %v404 = vmul.f32 %v378, %v383
        %v405 = vmul.f32 %v378, %v387
        %v406 = vmul.f32 %v378, %v391
        %v407 = vmul.f32 %v378, %v395
        %v408 = vadd.f32 %v356, %v396
        %v409 = vadd.f32 %v357, %v397
        %v410 = vadd.f32 %v358, %v398
        %v411 = vadd.f32 %v359, %v399
        %v412 = vadd.f32 %v360, %v400
        %v413 = vadd.f32 %v361, %v401
        %v414 = vadd.f32 %v362, %v402
        %v415 = vadd.f32 %v363, %v403
        %v416 = vadd.f32 %v364, %v404
        %v417 = vadd.f32 %v365, %v405
        %v418 = vadd.f32 %v366, %v406
        %v419 = vadd.f32 %v367, %v407
        %420 = vset.pattern.permute.xlu0 5
        %421 = vperm.xlu0 %420, %v162
        %v422 = vpop.permute.xlu0 %421
        %424 = vset.pattern.permute.xlu0 5
        %425 = vperm.xlu0 %424, %v163
        %v426 = vpop.permute.xlu0 %425
        %428 = vset.pattern.permute.xlu0 5
        %429 = vperm.xlu0 %428, %v164
        %v430 = vpop.permute.xlu0 %429
        %v432 = vadd.f32 %v408, %v422
        %v433 = vadd.f32 %v409, %v422
        %v434 = vadd.f32 %v410, %v422
        %v435 = vadd.f32 %v411, %v422
        %v436 = vadd.f32 %v412, %v426
        %v437 = vadd.f32 %v413, %v426
        %v438 = vadd.f32 %v414, %v426
        %v439 = vadd.f32 %v415, %v426
        %v440 = vadd.f32 %v416, %v430
        %v441 = vadd.f32 %v417, %v430
        %v442 = vadd.f32 %v418, %v430
        %v443 = vadd.f32 %v419, %v430
        %v444 = vmax.f32 %v432, 0.0
        %v445 = vmax.f32 %v433, 0.0
        %v446 = vmax.f32 %v434, 0.0
        %v447 = vmax.f32 %v435, 0.0
        %v448 = vmax.f32 %v436, 0.0
        %v449 = vmax.f32 %v437, 0.0
        %v450 = vmax.f32 %v438, 0.0
        %v451 = vmax.f32 %v439, 0.0
        %v452 = vmax.f32 %v440, 0.0
        %v453 = vmax.f32 %v441, 0.0
        %v454 = vmax.f32 %v442, 0.0
        %v455 = vmax.f32 %v443, 0.0
        %456 = vset.pattern.permute.xlu0 6
        %457 = vperm.xlu0 %456, %v162
        %v458 = vpop.permute.xlu0 %457
        %460 = vset.pattern.permute.xlu0 6
        %461 = vperm.xlu0 %460, %v163
        %v462 = vpop.permute.xlu0 %461
        %464 = vset.pattern.permute.xlu0 6
        %465 = vperm.xlu0 %464, %v164
        %v466 = vpop.permute.xlu0 %465
        %v468 = vmul.f32 %v444, %v458
        %v469 = vmul.f32 %v445, %v458
        %v470 = vmul.f32 %v446, %v458
        %v471 = vmul.f32 %v447, %v458
        %v472 = vmul.f32 %v448, %v462
        %v473 = vmul.f32 %v449, %v462
        %v474 = vmul.f32 %v450, %v462
        %v475 = vmul.f32 %v451, %v462
        %v476 = vmul.f32 %v452, %v466
        %v477 = vmul.f32 %v453, %v466
        %v478 = vmul.f32 %v454, %v466
        %v479 = vmul.f32 %v455, %v466
        %v480 = vadd.f32 %v468, %v472
        %vm481 = vcmask 1046528
        %v482 = vsel %vm481, %v476, 0.0
        %v483 = vadd.f32 %v480, %v482
        %v484 = vrot.slane %v483, 4
        %v485 = vadd.f32 %v483, %v484
        %v486 = vrot.slane %v485, 2
        %v487 = vadd.f32 %v485, %v486
        %v488 = vrot.slane %v487, 1
        %v489 = vadd.f32 %v487, %v488
        %v490 = vadd.f32 %v469, %v473
        %v491 = vsel %vm481, %v477, 0.0
        %v492 = vadd.f32 %v490, %v491
        %v493 = vrot.slane %v492, 4
        %v494 = vadd.f32 %v492, %v493
        %v495 = vrot.slane %v494, 2
        %v496 = vadd.f32 %v494, %v495
        %v497 = vrot.slane %v496, 1
        %v498 = vadd.f32 %v496, %v497
        %v499 = vadd.f32 %v470, %v474
        %v500 = vsel %vm481, %v478, 0.0
        %v501 = vadd.f32 %v499, %v500
        %v502 = vrot.slane %v501, 4
        %v503 = vadd.f32 %v501, %v502
        %v504 = vrot.slane %v503, 2
        %v505 = vadd.f32 %v503, %v504
        %v506 = vrot.slane %v505, 1
        %v507 = vadd.f32 %v505, %v506
        %v508 = vadd.f32 %v471, %v475
        %v509 = vsel %vm481, %v479, 0.0
        %v510 = vadd.f32 %v508, %v509
        %v511 = vrot.slane %v510, 4
        %v512 = vadd.f32 %v510, %v511
        %v513 = vrot.slane %v512, 2
        %v514 = vadd.f32 %v512, %v513
        %v515 = vrot.slane %v514, 1
        %v516 = vadd.f32 %v514, %v515
        %517 = vset.pattern.permute.xlu0 7
        %518 = vperm.xlu0 %517, %v162
        %v519 = vpop.permute.xlu0 %518
        %v521 = vadd.f32 %v489, %v519
        %v522 = vadd.f32 %v498, %v519
        %v523 = vadd.f32 %v507, %v519
        %v524 = vadd.f32 %v516, %v519
        %v529 = vcombine.low %v521, %v522
        %v530 = vcombine.low %v523, %v524
        %v532 = vunpack.c.l.s4 1966171168
        %v533 = vunpack.c.0.s8 %v532
        %v534 = vlaneseq
        %v535 = vshrl.u32 %v534, 7
        %v536 = vsub.s32 %v533, %v535
        %v537 = vrot.slane %v529, %v536
        %v539 = vunpack.c.l.s4 1966171168
        %v540 = vunpack.c.0.s8 %v539
        %v541 = vlaneseq
        %v542 = vshrl.u32 %v541, 7
        %v543 = vsub.s32 %v540, %v542
        %v544 = vrot.slane %v530, %v543
        %v545 = vcombine.low %v537, %v544
        %v547 = vunpack.c.l.s4 1966171168
        %v548 = vunpack.c.0.s8 %v547
        %v549 = vlaneseq
        %v550 = vshrl.u32 %v549, 7
        %v551 = vsub.s32 %v548, %v550
        %v552 = vrot.slane %v545, %v551
        %v554 = vlaneseq
        %vm555 = vcmp.ge.s32.totalorder %v554, 0
        %vm556 = vcmp.lt.s32.totalorder %v554, 512
        %vm557 = vmand %vm555, %vm556
        %558 = vst.msk [vmem:[%s159] sm:$0xf] %vm557, %v552
        %s559 = sand.u32 %s74, 1
        %s560 = scalar_lea.sflag [#allocation4], %s559
        %s561 = sand.u32 %s74, 1
        %s562 = smul.addr %s561, 4
        %s563 = scalar_lea.vmem [#allocation5], %s562
        // Predicated region
        $region33: #{tpu_custom_call.1} parent=27 // pred_check
          %p564 = pneg %p84
        $region34: #{tpu_custom_call.1} parent=27 // pred_check_branch
          %566 = sbr.rel (%p564) target = $region36
        $region35: #{tpu_custom_call.1} parent=27 // pred_region
          %s567 = smul.u32 4, %s19
          %s569 = ssub.s32 64, 64
          %570 = vsyncadd %s560, %s569
          %s571 = smul.addr %s567, 16
          %s572 = scalar_lea.hbm %s2, %s571
          %s574 = sshll.u32 %s563, 4
          %s575 = int_to_ptr.vmem [resolvable:$true] %s574
          %577 = dma.vmem_to_hbm [thread:$0]  %s575, 64, %s572, %s560
        $region36: #{tpu_custom_call.1} parent=27 // pred_fallthru
          _
      $region28: #{tpu_custom_call.1} parent=5 // pred_fallthru
        _
      %p578 = scmp.le.s32.totalorder 2, %s14
      // Predicated region
      $region37: #{tpu_custom_call.1} parent=5 // pred_check
        %p579 = pneg %p578
      $region38: #{tpu_custom_call.1} parent=5 // pred_check_branch
        %581 = sbr.rel (%p579) target = $region40
      $region39: #{tpu_custom_call.1} parent=5 // pred_region
        %s582 = ssub.s32 %s14, 2
        // Predicated region
        $region41: #{tpu_custom_call.1} parent=39 // pred_check
          %p583 = pneg %p90
        $region42: #{tpu_custom_call.1} parent=39 // pred_check_branch
          %585 = sbr.rel (%p583) target = $region44
        $region43: #{tpu_custom_call.1} parent=39 // pred_region
          %s586 = sand.u32 %s75, 1
          %s587 = scalar_lea.sflag [#allocation4], %s586
          %s588 = sand.u32 %s75, 1
          %s589 = smul.addr %s588, 4
          %s590 = scalar_lea.vmem [#allocation5], %s589
          %591 = dma.done %s587, 64
        $region44: #{tpu_custom_call.1} parent=39 // pred_fallthru
          _
      $region40: #{tpu_custom_call.1} parent=5 // pred_fallthru
        _
    $region6: #{tpu_custom_call.1} parent=1 // loop_footer
      %s18 = sadd.s32 1, %s14
    $region7: #{tpu_custom_call.1} parent=1 // loop_footer_branch
      %13 = sbr.rel target = $region3
    $region8: #{tpu_custom_call.1} parent=1 // loop_exit
      _
    %592 = vsyncpa [#allocation3], 1
    %s593 = scalar_lea.sflag [#allocation3], 1
    %594 = vsyncpa %s593, 1
    %595 = vsyncpa [#allocation4], 1
    %s596 = scalar_lea.sflag [#allocation4], 1
    %597 = vsyncpa %s596, 1

</llo_original>
